<compile_context>
chip_gen: v5e
topology: v5e:2x2
jax: 0.10.0
libtpu: 0.0.40
codegen_flags: <defaults>
</compile_context>

<pallas_src>
import functools

import jax
import jax.numpy as jnp
from jax import lax
from jax.experimental import pallas as pl
from jax.experimental.pallas import tpu as pltpu

NUM_RESIDUE_TYPE = 20
INPUT_DIM = NUM_RESIDUE_TYPE ** 2          # 400 dipeptide bins
PADDED_DIM = 512                           # 400 zero-padded to a lane multiple
HIDDEN_DIM = 512                           # hidden_dims=(512,) default
TILE_B = 256                               # batch rows per MLP grid step (v7x: 2 cores)
CHUNK_P = 512                              # residue pairs per histogram grid step

# torchdrug/zbiosynth residue-id order: G A S P V T C I L N D Q K E M H F R Y W
_ID2SYMBOL = "GASPVTCILNDQKEMHFRYW"
_CODONS = {'A': 4, 'C': 2, 'D': 2, 'E': 2, 'F': 2, 'G': 4, 'H': 2, 'I': 3, 'K': 2,
           'L': 6, 'M': 1, 'N': 2, 'P': 4, 'Q': 2, 'R': 6, 'S': 6, 'T': 4, 'V': 4,
           'W': 1, 'Y': 2}
CODONS = jnp.array([_CODONS[s] for s in _ID2SYMBOL], dtype=jnp.float32)


def _round_up(x, m):
    return (x + m - 1) // m * m


def dde_hist_kernel(gid_ref, dipep_ref, counts_ref):
    """Per pair-chunk: build one-hots in VMEM and MXU-accumulate dipeptide counts."""
    @pl.when(pl.program_id(0) == 0)
    def _():
        counts_ref[...] = jnp.zeros_like(counts_ref)

    chunk = dipep_ref.shape[0]
    bsz = counts_ref.shape[0]
    # g_oh[b, p] = (graph of pair p == b); padded / cross-graph pairs have gid = -1.
    g_oh = (gid_ref[...] ==
            lax.broadcasted_iota(jnp.int32, (bsz, chunk), 0)).astype(jnp.bfloat16)
    # d_oh[p, d] = (dipeptide id of pair p == d); lanes 400..511 never match.
    d_oh = (dipep_ref[...] ==
            lax.broadcasted_iota(jnp.int32, (chunk, PADDED_DIM), 1)).astype(jnp.bfloat16)
    counts_ref[...] += jnp.dot(g_oh, d_oh, preferred_element_type=jnp.float32)


def dde_mlp_kernel(counts_ref, w_ref, v_ref, b_ref, out_ref):
    """Per batch tile: relu(rsqrt(T) * (counts @ W') - sqrt(T) * v + b)."""
    counts = counts_ref[...]                           # (TB, 512) f32, integer-valued
    total = jnp.sum(counts, axis=-1, keepdims=True)    # (TB, 1) == num_residues - 1
    te = total + 1e-10
    r = lax.rsqrt(te)                                  # 1/sqrt(T)
    s = te * r                                         # sqrt(T) without a 2nd EUP op
    mm = jnp.dot(counts.astype(jnp.bfloat16), w_ref[...],   # bf16 MXU, f32 acc
                 preferred_element_type=jnp.float32)
    h = r * mm - s * v_ref[...] + b_ref[...]
    # TODO(synk): emit bf16 here if the downstream consumer accepts it (halves writeback).
    out_ref[...] = jnp.maximum(h, 0.0)


def prepare_params(w, b):
    """Fold the DDE standardization into the Linear(400,512) params (one-time, hoisted)."""
    w = jnp.asarray(w, jnp.float32)
    tm = (CODONS[:, None] * CODONS[None, :] / 61.0 ** 2).reshape(INPUT_DIM)   # (400,)
    s0_inv = 1.0 / jnp.sqrt(tm * (1.0 - tm))         # > 0 for every real bin (codons >= 1)
    w_fold = s0_inv[:, None] * w                                             # diag(s0_inv) @ W
    w_fold = jnp.pad(w_fold, ((0, PADDED_DIM - INPUT_DIM), (0, 0))).astype(jnp.bfloat16)
    v_fold = ((tm * s0_inv) @ w).reshape(1, HIDDEN_DIM).astype(jnp.float32)  # (1, 512)
    b_p = jnp.asarray(b, jnp.float32).reshape(1, HIDDEN_DIM)
    return w_fold, v_fold, b_p


@functools.partial(jax.jit, static_argnums=(2,))
def statistic_forward(residue_type, residue2graph, batch_size, w_fold, v_fold, b_p):
    num_residue = residue_type.shape[0]
    npairs = num_residue - 1

    # --- tiny int glue (~8 B/residue): dipeptide id + masked graph id per pair ---
    rt = residue_type.astype(jnp.int32)
    r2g = residue2graph.astype(jnp.int32)
    dipep = rt[:-1] * NUM_RESIDUE_TYPE + rt[1:]                      # (P,)
    gid = jnp.where(r2g[:-1] == r2g[1:], r2g[:-1], -1)               # -1 = cross-graph pair

    chunk = min(CHUNK_P, _round_up(npairs, 128))
    p_pad = _round_up(npairs, chunk)
    dipep_p = jnp.pad(dipep, (0, p_pad - npairs)).reshape(p_pad, 1)
    gid_p = jnp.pad(gid, (0, p_pad - npairs), constant_values=-1).reshape(1, p_pad)

    tb = min(TILE_B, _round_up(batch_size, 8))
    bp = _round_up(batch_size, tb)

    # --- kernel 1: per-graph dipeptide histogram, VMEM-resident accumulator ---
    counts = pl.pallas_call(
        dde_hist_kernel,
        out_shape=jax.ShapeDtypeStruct((bp, PADDED_DIM), jnp.float32),
        grid=(p_pad // chunk,),
        in_specs=[
            pl.BlockSpec((1, chunk), lambda c: (0, c)),              # graph ids (row)
            pl.BlockSpec((chunk, 1), lambda c: (c, 0)),              # dipeptide ids (col)
        ],
        out_specs=pl.BlockSpec((bp, PADDED_DIM), lambda c: (0, 0)),  # resident accumulator
        compiler_params=pltpu.CompilerParams(
            dimension_semantics=("arbitrary",)),
    )(gid_p, dipep_p)

    # --- kernel 2: DDE (folded into weights) + Linear + ReLU, tiled over batch ---
    out = pl.pallas_call(
        dde_mlp_kernel,
        out_shape=jax.ShapeDtypeStruct((bp, HIDDEN_DIM), jnp.float32),
        grid=(bp // tb,),
        in_specs=[
            pl.BlockSpec((tb, PADDED_DIM), lambda i: (i, 0)),            # counts tile
            pl.BlockSpec((PADDED_DIM, HIDDEN_DIM), lambda i: (0, 0)),    # W' bf16 (resident)
            pl.BlockSpec((1, HIDDEN_DIM), lambda i: (0, 0)),             # v = (tm*s0_inv) @ W
            pl.BlockSpec((1, HIDDEN_DIM), lambda i: (0, 0)),             # bias
        ],
        out_specs=pl.BlockSpec((tb, HIDDEN_DIM), lambda i: (i, 0)),
        compiler_params=pltpu.CompilerParams(
            dimension_semantics=("parallel",)),
    )(counts, w_fold, v_fold, b_p)
    return out[:batch_size]


def _reference(residue_type, residue2graph, batch_size, w, b):
    """Pure-JAX f32 reference mirroring the PyTorch forward."""
    idx = residue_type[:-1] * NUM_RESIDUE_TYPE + residue_type[1:]
    gidx = residue2graph[:-1] * INPUT_DIM + idx
    mask = (residue2graph[:-1] == residue2graph[1:]).astype(jnp.float32)
    feature = jnp.zeros((batch_size * INPUT_DIM,), jnp.float32).at[gidx].add(mask)
    feature = feature.reshape(batch_size, INPUT_DIM)
    feature = feature / (feature.sum(-1, keepdims=True) + 1e-10)
    tm = (CODONS[None, :] * CODONS[:, None] / 61.0 ** 2).reshape(-1)
    num_residues = jnp.zeros((batch_size,), jnp.float32).at[residue2graph].add(1.0)
    tv = (tm * (1.0 - tm))[None, :] / (num_residues - 1.0 + 1e-10)[:, None]
    feature = (feature - tm[None, :]) / (jnp.sqrt(tv) + 1e-10)
    return jnp.maximum(feature @ w + b, 0.0)


if __name__ == "__main__":
    key = jax.random.PRNGKey(0)
    k1, k2, k3 = jax.random.split(key, 3)

    batch_size = 2
    lengths = [25, 30]                       # two small proteins (packed contiguously)
    num_residue = sum(lengths)
    residue_type = jax.random.randint(
        k1, (num_residue,), 0, NUM_RESIDUE_TYPE, dtype=jnp.int32)
    residue2graph = jnp.concatenate(
        [jnp.full((l,), i, jnp.int32) for i, l in enumerate(lengths)])

    # Deterministic Linear(400, 512) parameters (synthetic init, no checkpoint).
    w = jax.random.normal(k2, (INPUT_DIM, HIDDEN_DIM), jnp.float32) * 0.02
    b = jax.random.normal(k3, (HIDDEN_DIM,), jnp.float32) * 0.01

    w_fold, v_fold, b_p = prepare_params(w, b)
    out = statistic_forward(residue_type, residue2graph, batch_size,
                            w_fold, v_fold, b_p)
    out = jax.block_until_ready(out)

    ref = _reference(residue_type, residue2graph, batch_size, w, b)
    assert out.shape == (batch_size, HIDDEN_DIM)
    # bf16 MXU operands vs. the pure-f32 reference.
    err = float(jnp.max(jnp.abs(out - ref)))
    assert jnp.allclose(out, ref, rtol=1e-2, atol=1e-2), f"max abs err {err}"
    print("KERNEL_OK")
</pallas_src>

<mosaic_0001>
module attributes {stable_mosaic.version = 11 : i64} {
  func.func @dde_hist_kernel(%arg0: i32, %arg1: memref<1x128xi32, #tpu.memory_space<vmem>>, %arg2: memref<128x1xi32, #tpu.memory_space<vmem>>, %arg3: memref<8x512xf32, #tpu.memory_space<vmem>>) attributes {dimension_semantics = [#tpu.dimension_semantics<arbitrary>], iteration_bounds = array<i64: 1>, scalar_prefetch = 0 : i64, scratch_operands = 0 : i64, tpu.core_type = #tpu.core_type<tc>, window_params = [{transform_indices = @transform_0, window_bounds = array<i64: 1, 128>}, {transform_indices = @transform_1, window_bounds = array<i64: 128, 1>}, {pipeline_mode = #tpu.pipeline_mode<synchronous>, transform_indices = @transform_2, window_bounds = array<i64: 8, 512>}]} {
    %c0_i32 = arith.constant 0 : i32
    %0 = arith.cmpi eq, %arg0, %c0_i32 : i32
    %1 = arith.extui %0 : i1 to i32
    %c0_i32_0 = arith.constant 0 : i32
    %2 = arith.cmpi ne, %1, %c0_i32_0 : i32
    scf.if %2 {
      %cst_8 = arith.constant 0.000000e+00 : f32
      %21 = vector.broadcast %cst_8 : f32 to vector<8x512xf32>
      %c0_9 = arith.constant 0 : index
      %c0_10 = arith.constant 0 : index
      %22 = vector.load %arg3[%c0_9, %c0_10] : memref<8x512xf32, #tpu.memory_space<vmem>>, vector<8x512xf32>
      tpu.vector_store %arg3[%c0_9, %c0_10], %21 {strides = array<i32>} : memref<8x512xf32, #tpu.memory_space<vmem>>, vector<8x512xf32>,
    } else {
    }
    %c0 = arith.constant 0 : index
    %c0_1 = arith.constant 0 : index
    %3 = vector.load %arg1[%c0, %c0_1] : memref<1x128xi32, #tpu.memory_space<vmem>>, vector<1x128xi32>
    %4 = tpu.iota {dimensions = array<i32: 0>} : vector<8x128xi32>
    %5 = vector.broadcast %3 : vector<1x128xi32> to vector<8x128xi32>
    %6 = arith.cmpi eq, %5, %4 : vector<8x128xi32>
    %7 = arith.extui %6 : vector<8x128xi1> to vector<8x128xi32>
    %8 = arith.sitofp %7 : vector<8x128xi32> to vector<8x128xf32>
    %9 = arith.truncf %8 : vector<8x128xf32> to vector<8x128xbf16>
    %c0_2 = arith.constant 0 : index
    %c0_3 = arith.constant 0 : index
    %10 = vector.load %arg2[%c0_2, %c0_3] : memref<128x1xi32, #tpu.memory_space<vmem>>, vector<128x1xi32>
    %11 = tpu.iota {dimensions = array<i32: 1>} : vector<128x512xi32>
    %12 = vector.broadcast %10 : vector<128x1xi32> to vector<128x512xi32>
    %13 = arith.cmpi eq, %12, %11 : vector<128x512xi32>
    %14 = arith.extui %13 : vector<128x512xi1> to vector<128x512xi32>
    %15 = arith.sitofp %14 : vector<128x512xi32> to vector<128x512xf32>
    %16 = arith.truncf %15 : vector<128x512xf32> to vector<128x512xbf16>
    %c0_4 = arith.constant 0 : index
    %c0_5 = arith.constant 0 : index
    %17 = vector.load %arg3[%c0_4, %c0_5] : memref<8x512xf32, #tpu.memory_space<vmem>>, vector<8x512xf32>
    %cst = arith.constant dense<0.000000e+00> : vector<8x512xf32>
    %18 = tpu.matmul %9, %16, %cst {dimension_numbers = #tpu.dot_dimension_numbers<[1], [0], [0], [1], [0, 0, 1, 1], [], []>} : vector<8x128xbf16>, vector<128x512xbf16>, vector<8x512xf32> -> vector<8x512xf32>
    %19 = arith.addf %17, %18 : vector<8x512xf32>
    %c0_6 = arith.constant 0 : index
    %c0_7 = arith.constant 0 : index
    %20 = vector.load %arg3[%c0_6, %c0_7] : memref<8x512xf32, #tpu.memory_space<vmem>>, vector<8x512xf32>
    tpu.vector_store %arg3[%c0_6, %c0_7], %19 {strides = array<i32>} : memref<8x512xf32, #tpu.memory_space<vmem>>, vector<8x512xf32>,
    return
  }
  func.func @transform_0(%arg0: i32) -> (i32, i32) {
    %c0_i32 = arith.constant 0 : i32
    %c0_i32_0 = arith.constant 0 : i32
    return %c0_i32, %arg0 : i32, i32
  }
  func.func @transform_1(%arg0: i32) -> (i32, i32) {
    %c0_i32 = arith.constant 0 : i32
    %c0_i32_0 = arith.constant 0 : i32
    return %arg0, %c0_i32 : i32, i32
  }
  func.func @transform_2(%arg0: i32) -> (i32, i32) {
    %c0_i32 = arith.constant 0 : i32
    %c0_i32_0 = arith.constant 0 : i32
    %c0_i32_1 = arith.constant 0 : i32
    return %c0_i32, %c0_i32_0 : i32, i32
  }
}

module attributes {stable_mosaic.version = 11 : i64} {
  func.func @dde_mlp_kernel(%arg0: i32, %arg1: memref<8x512xf32, #tpu.memory_space<vmem>>, %arg2: memref<512x512xbf16, #tpu.memory_space<vmem>>, %arg3: memref<1x512xf32, #tpu.memory_space<vmem>>, %arg4: memref<1x512xf32, #tpu.memory_space<vmem>>, %arg5: memref<8x512xf32, #tpu.memory_space<vmem>>) attributes {dimension_semantics = [#tpu.dimension_semantics<parallel>], iteration_bounds = array<i64: 1>, scalar_prefetch = 0 : i64, scratch_operands = 0 : i64, tpu.core_type = #tpu.core_type<tc>, window_params = [{transform_indices = @transform_0, window_bounds = array<i64: 8, 512>}, {pipeline_mode = #tpu.pipeline_mode<synchronous>, transform_indices = @transform_1, window_bounds = array<i64: 512, 512>}, {pipeline_mode = #tpu.pipeline_mode<synchronous>, transform_indices = @transform_2, window_bounds = array<i64: 1, 512>}, {pipeline_mode = #tpu.pipeline_mode<synchronous>, transform_indices = @transform_3, window_bounds = array<i64: 1, 512>}, {transform_indices = @transform_4, window_bounds = array<i64: 8, 512>}]} {
    %c0 = arith.constant 0 : index
    %c0_0 = arith.constant 0 : index
    %0 = vector.load %arg1[%c0, %c0_0] : memref<8x512xf32, #tpu.memory_space<vmem>>, vector<8x512xf32>
    %cst = arith.constant dense<0.000000e+00> : vector<8xf32>
    %1 = vector.multi_reduction <add>, %0, %cst [1] : vector<8x512xf32> to vector<8xf32>
    %2 = vector.shape_cast %1 : vector<8xf32> to vector<8x1xf32>
    %cst_1 = arith.constant 1.000000e-10 : f32
    %3 = vector.broadcast %cst_1 : f32 to vector<8x1xf32>
    %4 = arith.addf %2, %3 : vector<8x1xf32>
    %5 = math.rsqrt %4 : vector<8x1xf32>
    %6 = arith.mulf %4, %5 : vector<8x1xf32>
    %7 = arith.truncf %0 : vector<8x512xf32> to vector<8x512xbf16>
    %c0_2 = arith.constant 0 : index
    %c0_3 = arith.constant 0 : index
    %8 = vector.load %arg2[%c0_2, %c0_3] : memref<512x512xbf16, #tpu.memory_space<vmem>>, vector<512x512xbf16>
    %cst_4 = arith.constant dense<0.000000e+00> : vector<8x512xf32>
    %9 = tpu.matmul %7, %8, %cst_4 {dimension_numbers = #tpu.dot_dimension_numbers<[1], [0], [0], [1], [0, 0, 1, 1], [], []>} : vector<8x512xbf16>, vector<512x512xbf16>, vector<8x512xf32> -> vector<8x512xf32>
    %10 = vector.broadcast %5 : vector<8x1xf32> to vector<8x512xf32>
    %11 = arith.mulf %10, %9 : vector<8x512xf32>
    %c0_5 = arith.constant 0 : index
    %c0_6 = arith.constant 0 : index
    %12 = vector.load %arg3[%c0_5, %c0_6] : memref<1x512xf32, #tpu.memory_space<vmem>>, vector<1x512xf32>
    %13 = vector.broadcast %6 : vector<8x1xf32> to vector<8x512xf32>
    %14 = vector.broadcast %12 : vector<1x512xf32> to vector<8x512xf32>
    %15 = arith.mulf %13, %14 : vector<8x512xf32>
    %16 = arith.subf %11, %15 : vector<8x512xf32>
    %c0_7 = arith.constant 0 : index
    %c0_8 = arith.constant 0 : index
    %17 = vector.load %arg4[%c0_7, %c0_8] : memref<1x512xf32, #tpu.memory_space<vmem>>, vector<1x512xf32>
    %18 = vector.broadcast %17 : vector<1x512xf32> to vector<8x512xf32>
    %19 = arith.addf %16, %18 : vector<8x512xf32>
    %cst_9 = arith.constant 0.000000e+00 : f32
    %20 = vector.broadcast %cst_9 : f32 to vector<8x512xf32>
    %21 = arith.maximumf %19, %20 : vector<8x512xf32>
    %c0_10 = arith.constant 0 : index
    %c0_11 = arith.constant 0 : index
    %22 = vector.load %arg5[%c0_10, %c0_11] : memref<8x512xf32, #tpu.memory_space<vmem>>, vector<8x512xf32>
    tpu.vector_store %arg5[%c0_10, %c0_11], %21 {strides = array<i32>} : memref<8x512xf32, #tpu.memory_space<vmem>>, vector<8x512xf32>,
    return
  }
  func.func @transform_0(%arg0: i32) -> (i32, i32) {
    %c0_i32 = arith.constant 0 : i32
    %c0_i32_0 = arith.constant 0 : i32
    return %arg0, %c0_i32 : i32, i32
  }
  func.func @transform_1(%arg0: i32) -> (i32, i32) {
    %c0_i32 = arith.constant 0 : i32
    %c0_i32_0 = arith.constant 0 : i32
    %c0_i32_1 = arith.constant 0 : i32
    return %c0_i32, %c0_i32_0 : i32, i32
  }
  func.func @transform_2(%arg0: i32) -> (i32, i32) {
    %c0_i32 = arith.constant 0 : i32
    %c0_i32_0 = arith.constant 0 : i32
    %c0_i32_1 = arith.constant 0 : i32
    return %c0_i32, %c0_i32_0 : i32, i32
  }
  func.func @transform_3(%arg0: i32) -> (i32, i32) {
    %c0_i32 = arith.constant 0 : i32
    %c0_i32_0 = arith.constant 0 : i32
    %c0_i32_1 = arith.constant 0 : i32
    return %c0_i32, %c0_i32_0 : i32, i32
  }
  func.func @transform_4(%arg0: i32) -> (i32, i32) {
    %c0_i32 = arith.constant 0 : i32
    %c0_i32_0 = arith.constant 0 : i32
    return %arg0, %c0_i32 : i32, i32
  }
}

</mosaic_0001>

<llo_original>
// kernel: statistic_forward.2
$region0: #{statistic_forward.2}
  #allocation0 [shape = 'u32[]', space=smem, size = 0x4, offset = 0x4, fixed_abs, tag = 'smem constant byte address 0x4 - core index']
  #allocation1 [shape = 'u32[72,128]{1,0:T(1,128)}', space=vmem, size = 0x9000, scoped, tag = 'internal scratch']
  %s0 = inlined_call_operand.vmem [shape: s32[1,128], index: 0, kind: input, shape index: {}]
  %s1 = inlined_call_operand.vmem [shape: s32[128,1], index: 1, kind: input, shape index: {}]
  %s2 = inlined_call_operand.vmem [shape: f32[8,512], index: 2, kind: output, shape index: {}]
  %s3 = sld [smem:[#allocation0]]
  $region22: #{statistic_forward.2} parent=0
    _
  %s5 = ssub.s32 1, %s3
  %s6 = scalar_select 0, %s5, %s3
  // Predicated region
  $region2: #{statistic_forward.2} parent=0 // pred_check
    _
  $region3: #{statistic_forward.2} parent=0 // pred_check_branch
    %8 = sbr.rel (0) target = $region5
  $region4: #{statistic_forward.2} parent=0 // pred_region
    _
  $region5: #{statistic_forward.2} parent=0 // pred_fallthru
    _
  // Predicated region
  $region6: #{statistic_forward.2} parent=0 // pred_check
    _
  $region7: #{statistic_forward.2} parent=0 // pred_check_branch
    %10 = sbr.rel (0) target = $region9
  $region8: #{statistic_forward.2} parent=0 // pred_region
    _
  $region9: #{statistic_forward.2} parent=0 // pred_fallthru
    _
  %p11 = scmp.eq.s32.totalorder 0, 0
  // Predicated region
  $region10: #{statistic_forward.2} parent=0 // pred_check
    %p12 = pneg %p11
  $region11: #{statistic_forward.2} parent=0 // pred_check_branch
    %14 = sbr.rel (%p12) target = $region13
  $region12: #{statistic_forward.2} parent=0 // pred_region
    %15 = vst [vmem:[%s2] sm:$0xff] 0.0
    %16 = vst [vmem:[%s2 + $0x8] sm:$0xff] 0.0
    %17 = vst [vmem:[%s2 + $0x10] sm:$0xff] 0.0
    %18 = vst [vmem:[%s2 + $0x18] sm:$0xff] 0.0
  $region13: #{statistic_forward.2} parent=0 // pred_fallthru
    _
  %v19 = vld [vmem:[%s0] sm:$0x1]
  %v20 = vlaneseq
  %v21 = vshrl.u32 %v20, 7
  %v22 = vperm.slane %v19, 0
  %vm23 = vcmp.eq.s32.totalorder %v22, %v21
  %v24 = vsel %vm23, 1, 0
  %v25 = vcvt.s32.f32 %v24
  %v26 = vpack.c.bf16 %v25, %v25
  %v27 = vld [vmem:[%s1] sm:$0xff]
  %v28 = vld [vmem:[%s1 + $0x8] sm:$0xff]
  %v29 = vld [vmem:[%s1 + $0x10] sm:$0xff]
  %v30 = vld [vmem:[%s1 + $0x18] sm:$0xff]
  %v31 = vld [vmem:[%s1 + $0x20] sm:$0xff]
  %v32 = vld [vmem:[%s1 + $0x28] sm:$0xff]
  %v33 = vld [vmem:[%s1 + $0x30] sm:$0xff]
  %v34 = vld [vmem:[%s1 + $0x38] sm:$0xff]
  %v35 = vld [vmem:[%s1 + $0x40] sm:$0xff]
  %v36 = vld [vmem:[%s1 + $0x48] sm:$0xff]
  %v37 = vld [vmem:[%s1 + $0x50] sm:$0xff]
  %v38 = vld [vmem:[%s1 + $0x58] sm:$0xff]
  %v39 = vld [vmem:[%s1 + $0x60] sm:$0xff]
  %v40 = vld [vmem:[%s1 + $0x68] sm:$0xff]
  %v41 = vld [vmem:[%s1 + $0x70] sm:$0xff]
  %v42 = vld [vmem:[%s1 + $0x78] sm:$0xff]
  %v43 = vlaneseq
  %v44 = vand.u32 %v43, 127
  %v45 = vadd.s32 %v44, 128
  %v46 = vadd.s32 %v44, 256
  %v47 = vadd.s32 %v44, 384
  %48 = vset.pattern.permute.xlu0 0
  %49 = vperm.xlu0 %48, %v27
  %v50 = vpop.permute.xlu0 %49
  %51 = vset.pattern.permute.xlu0 0
  %52 = vperm.xlu0 %51, %v28
  %v53 = vpop.permute.xlu0 %52
  %54 = vset.pattern.permute.xlu0 0
  %55 = vperm.xlu0 %54, %v29
  %v56 = vpop.permute.xlu0 %55
  %57 = vset.pattern.permute.xlu0 0
  %58 = vperm.xlu0 %57, %v30
  %v59 = vpop.permute.xlu0 %58
  %60 = vset.pattern.permute.xlu0 0
  %61 = vperm.xlu0 %60, %v31
  %v62 = vpop.permute.xlu0 %61
  %63 = vset.pattern.permute.xlu0 0
  %64 = vperm.xlu0 %63, %v32
  %v65 = vpop.permute.xlu0 %64
  %66 = vset.pattern.permute.xlu0 0
  %67 = vperm.xlu0 %66, %v33
  %v68 = vpop.permute.xlu0 %67
  %69 = vset.pattern.permute.xlu0 0
  %70 = vperm.xlu0 %69, %v34
  %v71 = vpop.permute.xlu0 %70
  %72 = vset.pattern.permute.xlu0 0
  %73 = vperm.xlu0 %72, %v35
  %v74 = vpop.permute.xlu0 %73
  %75 = vset.pattern.permute.xlu0 0
  %76 = vperm.xlu0 %75, %v36
  %v77 = vpop.permute.xlu0 %76
  %78 = vset.pattern.permute.xlu0 0
  %79 = vperm.xlu0 %78, %v37
  %v80 = vpop.permute.xlu0 %79
  %81 = vset.pattern.permute.xlu0 0
  %82 = vperm.xlu0 %81, %v38
  %v83 = vpop.permute.xlu0 %82
  %84 = vset.pattern.permute.xlu0 0
  %85 = vperm.xlu0 %84, %v39
  %v86 = vpop.permute.xlu0 %85
  %87 = vset.pattern.permute.xlu0 0
  %88 = vperm.xlu0 %87, %v40
  %v89 = vpop.permute.xlu0 %88
  %90 = vset.pattern.permute.xlu0 0
  %91 = vperm.xlu0 %90, %v41
  %v92 = vpop.permute.xlu0 %91
  %93 = vset.pattern.permute.xlu0 0
  %94 = vperm.xlu0 %93, %v42
  %v95 = vpop.permute.xlu0 %94
  %vm96 = vcmp.eq.s32.totalorder %v50, %v44
  %vm97 = vcmp.eq.s32.totalorder %v50, %v45
  %vm98 = vcmp.eq.s32.totalorder %v50, %v46
  %vm99 = vcmp.eq.s32.totalorder %v50, %v47
  %vm100 = vcmp.eq.s32.totalorder %v53, %v44
  %vm101 = vcmp.eq.s32.totalorder %v53, %v45
  %vm102 = vcmp.eq.s32.totalorder %v53, %v46
  %vm103 = vcmp.eq.s32.totalorder %v53, %v47
  %vm104 = vcmp.eq.s32.totalorder %v56, %v44
  %vm105 = vcmp.eq.s32.totalorder %v56, %v45
  %vm106 = vcmp.eq.s32.totalorder %v56, %v46
  %vm107 = vcmp.eq.s32.totalorder %v56, %v47
  %vm108 = vcmp.eq.s32.totalorder %v59, %v44
  %vm109 = vcmp.eq.s32.totalorder %v59, %v45
  %vm110 = vcmp.eq.s32.totalorder %v59, %v46
  %vm111 = vcmp.eq.s32.totalorder %v59, %v47
  %vm112 = vcmp.eq.s32.totalorder %v62, %v44
  %vm113 = vcmp.eq.s32.totalorder %v62, %v45
  %vm114 = vcmp.eq.s32.totalorder %v62, %v46
  %vm115 = vcmp.eq.s32.totalorder %v62, %v47
  %vm116 = vcmp.eq.s32.totalorder %v65, %v44
  %vm117 = vcmp.eq.s32.totalorder %v65, %v45
  %vm118 = vcmp.eq.s32.totalorder %v65, %v46
  %vm119 = vcmp.eq.s32.totalorder %v65, %v47
  %vm120 = vcmp.eq.s32.totalorder %v68, %v44
  %vm121 = vcmp.eq.s32.totalorder %v68, %v45
  %vm122 = vcmp.eq.s32.totalorder %v68, %v46
  %vm123 = vcmp.eq.s32.totalorder %v68, %v47
  %vm124 = vcmp.eq.s32.totalorder %v71, %v44
  %vm125 = vcmp.eq.s32.totalorder %v71, %v45
  %vm126 = vcmp.eq.s32.totalorder %v71, %v46
  %vm127 = vcmp.eq.s32.totalorder %v71, %v47
  %vm128 = vcmp.eq.s32.totalorder %v74, %v44
  %vm129 = vcmp.eq.s32.totalorder %v74, %v45
  %vm130 = vcmp.eq.s32.totalorder %v74, %v46
  %vm131 = vcmp.eq.s32.totalorder %v74, %v47
  %vm132 = vcmp.eq.s32.totalorder %v77, %v44
  %vm133 = vcmp.eq.s32.totalorder %v77, %v45
  %vm134 = vcmp.eq.s32.totalorder %v77, %v46
  %vm135 = vcmp.eq.s32.totalorder %v77, %v47
  %vm136 = vcmp.eq.s32.totalorder %v80, %v44
  %vm137 = vcmp.eq.s32.totalorder %v80, %v45
  %vm138 = vcmp.eq.s32.totalorder %v80, %v46
  %vm139 = vcmp.eq.s32.totalorder %v80, %v47
  %vm140 = vcmp.eq.s32.totalorder %v83, %v44
  %vm141 = vcmp.eq.s32.totalorder %v83, %v45
  %vm142 = vcmp.eq.s32.totalorder %v83, %v46
  %vm143 = vcmp.eq.s32.totalorder %v83, %v47
  %vm144 = vcmp.eq.s32.totalorder %v86, %v44
  %vm145 = vcmp.eq.s32.totalorder %v86, %v45
  %vm146 = vcmp.eq.s32.totalorder %v86, %v46
  %vm147 = vcmp.eq.s32.totalorder %v86, %v47
  %vm148 = vcmp.eq.s32.totalorder %v89, %v44
  %vm149 = vcmp.eq.s32.totalorder %v89, %v45
  %vm150 = vcmp.eq.s32.totalorder %v89, %v46
  %vm151 = vcmp.eq.s32.totalorder %v89, %v47
  %vm152 = vcmp.eq.s32.totalorder %v92, %v44
  %vm153 = vcmp.eq.s32.totalorder %v92, %v45
  %vm154 = vcmp.eq.s32.totalorder %v92, %v46
  %vm155 = vcmp.eq.s32.totalorder %v92, %v47
  %vm156 = vcmp.eq.s32.totalorder %v95, %v44
  %vm157 = vcmp.eq.s32.totalorder %v95, %v45
  %vm158 = vcmp.eq.s32.totalorder %v95, %v46
  %vm159 = vcmp.eq.s32.totalorder %v95, %v47
  %v160 = vsel %vm96, 1, 0
  %v161 = vsel %vm97, 1, 0
  %v162 = vsel %vm98, 1, 0
  %v163 = vsel %vm99, 1, 0
  %v164 = vsel %vm100, 1, 0
  %v165 = vsel %vm101, 1, 0
  %v166 = vsel %vm102, 1, 0
  %v167 = vsel %vm103, 1, 0
  %v168 = vsel %vm104, 1, 0
  %v169 = vsel %vm105, 1, 0
  %v170 = vsel %vm106, 1, 0
  %v171 = vsel %vm107, 1, 0
  %v172 = vsel %vm108, 1, 0
  %v173 = vsel %vm109, 1, 0
  %v174 = vsel %vm110, 1, 0
  %v175 = vsel %vm111, 1, 0
  %v176 = vsel %vm112, 1, 0
  %v177 = vsel %vm113, 1, 0
  %v178 = vsel %vm114, 1, 0
  %v179 = vsel %vm115, 1, 0
  %v180 = vsel %vm116, 1, 0
  %v181 = vsel %vm117, 1, 0
  %v182 = vsel %vm118, 1, 0
  %v183 = vsel %vm119, 1, 0
  %v184 = vsel %vm120, 1, 0
  %v185 = vsel %vm121, 1, 0
  %v186 = vsel %vm122, 1, 0
  %v187 = vsel %vm123, 1, 0
  %v188 = vsel %vm124, 1, 0
  %v189 = vsel %vm125, 1, 0
  %v190 = vsel %vm126, 1, 0
  %v191 = vsel %vm127, 1, 0
  %v192 = vsel %vm128, 1, 0
  %v193 = vsel %vm129, 1, 0
  %v194 = vsel %vm130, 1, 0
  %v195 = vsel %vm131, 1, 0
  %v196 = vsel %vm132, 1, 0
  %v197 = vsel %vm133, 1, 0
  %v198 = vsel %vm134, 1, 0
  %v199 = vsel %vm135, 1, 0
  %v200 = vsel %vm136, 1, 0
  %v201 = vsel %vm137, 1, 0
  %v202 = vsel %vm138, 1, 0
  %v203 = vsel %vm139, 1, 0
  %v204 = vsel %vm140, 1, 0
  %v205 = vsel %vm141, 1, 0
  %v206 = vsel %vm142, 1, 0
  %v207 = vsel %vm143, 1, 0
  %v208 = vsel %vm144, 1, 0
  %v209 = vsel %vm145, 1, 0
  %v210 = vsel %vm146, 1, 0
  %v211 = vsel %vm147, 1, 0
  %v212 = vsel %vm148, 1, 0
  %v213 = vsel %vm149, 1, 0
  %v214 = vsel %vm150, 1, 0
  %v215 = vsel %vm151, 1, 0
  %v216 = vsel %vm152, 1, 0
  %v217 = vsel %vm153, 1, 0
  %v218 = vsel %vm154, 1, 0
  %v219 = vsel %vm155, 1, 0
  %v220 = vsel %vm156, 1, 0
  %v221 = vsel %vm157, 1, 0
  %v222 = vsel %vm158, 1, 0
  %v223 = vsel %vm159, 1, 0
  %v224 = vcvt.s32.f32 %v160
  %v225 = vcvt.s32.f32 %v161
  %v226 = vcvt.s32.f32 %v162
  %v227 = vcvt.s32.f32 %v163
  %v228 = vcvt.s32.f32 %v164
  %v229 = vcvt.s32.f32 %v165
  %v230 = vcvt.s32.f32 %v166
  %v231 = vcvt.s32.f32 %v167
  %v232 = vcvt.s32.f32 %v168
  %v233 = vcvt.s32.f32 %v169
  %v234 = vcvt.s32.f32 %v170
  %v235 = vcvt.s32.f32 %v171
  %v236 = vcvt.s32.f32 %v172
  %v237 = vcvt.s32.f32 %v173
  %v238 = vcvt.s32.f32 %v174
  %v239 = vcvt.s32.f32 %v175
  %v240 = vcvt.s32.f32 %v176
  %v241 = vcvt.s32.f32 %v177
  %v242 = vcvt.s32.f32 %v178
  %v243 = vcvt.s32.f32 %v179
  %v244 = vcvt.s32.f32 %v180
  %v245 = vcvt.s32.f32 %v181
  %v246 = vcvt.s32.f32 %v182
  %v247 = vcvt.s32.f32 %v183
  %v248 = vcvt.s32.f32 %v184
  %v249 = vcvt.s32.f32 %v185
  %v250 = vcvt.s32.f32 %v186
  %v251 = vcvt.s32.f32 %v187
  %v252 = vcvt.s32.f32 %v188
  %v253 = vcvt.s32.f32 %v189
  %v254 = vcvt.s32.f32 %v190
  %v255 = vcvt.s32.f32 %v191
  %v256 = vcvt.s32.f32 %v192
  %v257 = vcvt.s32.f32 %v193
  %v258 = vcvt.s32.f32 %v194
  %v259 = vcvt.s32.f32 %v195
  %v260 = vcvt.s32.f32 %v196
  %v261 = vcvt.s32.f32 %v197
  %v262 = vcvt.s32.f32 %v198
  %v263 = vcvt.s32.f32 %v199
  %v264 = vcvt.s32.f32 %v200
  %v265 = vcvt.s32.f32 %v201
  %v266 = vcvt.s32.f32 %v202
  %v267 = vcvt.s32.f32 %v203
  %v268 = vcvt.s32.f32 %v204
  %v269 = vcvt.s32.f32 %v205
  %v270 = vcvt.s32.f32 %v206
  %v271 = vcvt.s32.f32 %v207
  %v272 = vcvt.s32.f32 %v208
  %v273 = vcvt.s32.f32 %v209
  %v274 = vcvt.s32.f32 %v210
  %v275 = vcvt.s32.f32 %v211
  %v276 = vcvt.s32.f32 %v212
  %v277 = vcvt.s32.f32 %v213
  %v278 = vcvt.s32.f32 %v214
  %v279 = vcvt.s32.f32 %v215
  %v280 = vcvt.s32.f32 %v216
  %v281 = vcvt.s32.f32 %v217
  %v282 = vcvt.s32.f32 %v218
  %v283 = vcvt.s32.f32 %v219
  %v284 = vcvt.s32.f32 %v220
  %v285 = vcvt.s32.f32 %v221
  %v286 = vcvt.s32.f32 %v222
  %v287 = vcvt.s32.f32 %v223
  %v288 = vpack.c.bf16 %v228, %v224
  %v289 = vpack.c.bf16 %v229, %v225
  %v290 = vpack.c.bf16 %v230, %v226
  %v291 = vpack.c.bf16 %v231, %v227
  %v292 = vpack.c.bf16 %v236, %v232
  %v293 = vpack.c.bf16 %v237, %v233
  %v294 = vpack.c.bf16 %v238, %v234
  %v295 = vpack.c.bf16 %v239, %v235
  %v296 = vpack.c.bf16 %v244, %v240
  %v297 = vpack.c.bf16 %v245, %v241
  %v298 = vpack.c.bf16 %v246, %v242
  %v299 = vpack.c.bf16 %v247, %v243
  %v300 = vpack.c.bf16 %v252, %v248
  %v301 = vpack.c.bf16 %v253, %v249
  %v302 = vpack.c.bf16 %v254, %v250
  %v303 = vpack.c.bf16 %v255, %v251
  %v304 = vpack.c.bf16 %v260, %v256
  %v305 = vpack.c.bf16 %v261, %v257
  %v306 = vpack.c.bf16 %v262, %v258
  %v307 = vpack.c.bf16 %v263, %v259
  %v308 = vpack.c.bf16 %v268, %v264
  %v309 = vpack.c.bf16 %v269, %v265
  %v310 = vpack.c.bf16 %v270, %v266
  %v311 = vpack.c.bf16 %v271, %v267
  %v312 = vpack.c.bf16 %v276, %v272
  %v313 = vpack.c.bf16 %v277, %v273
  %v314 = vpack.c.bf16 %v278, %v274
  %v315 = vpack.c.bf16 %v279, %v275
  %v316 = vpack.c.bf16 %v284, %v280
  %v317 = vpack.c.bf16 %v285, %v281
  %v318 = vpack.c.bf16 %v286, %v282
  %v319 = vpack.c.bf16 %v287, %v283
  %v320 = vld [vmem:[%s2] sm:$0xff]
  %v321 = vld [vmem:[%s2 + $0x8] sm:$0xff]
  %v322 = vld [vmem:[%s2 + $0x10] sm:$0xff]
  %v323 = vld [vmem:[%s2 + $0x18] sm:$0xff]
  %324 = vmatpush.bf16.msra.mxu0 %v316
  %325 = vmatpush.bf16.msra.mxu0 %v312
  %326 = vmatpush.bf16.msra.mxu0 %v308
  %327 = vmatpush.bf16.msra.mxu0 %v304
  %328 = vmatpush.bf16.msra.mxu0 %v300
  %329 = vmatpush.bf16.msra.mxu0 %v296
  %330 = vmatpush.bf16.msra.mxu0 %v292
  %331 = vmatpush.bf16.msra.mxu0 %v288
  %332 = vmatmul.bf16.gmra.mxu0 %v26
  %v333 = vpop.f32.mrf.mxu0
  %v334 = vadd.f32 0.0, %v333
  %v335 = vpop.f32.mrf.mxu0
  %336 = vdwg.mxu0
  %337 = vmatpush.bf16.msra.mxu0 %v317
  %338 = vmatpush.bf16.msra.mxu0 %v313
  %339 = vmatpush.bf16.msra.mxu0 %v309
  %340 = vmatpush.bf16.msra.mxu0 %v305
  %341 = vmatpush.bf16.msra.mxu0 %v301
  %342 = vmatpush.bf16.msra.mxu0 %v297
  %343 = vmatpush.bf16.msra.mxu0 %v293
  %344 = vmatpush.bf16.msra.mxu0 %v289
  %345 = vmatmul.bf16.gmra.mxu0 %v26
  %v346 = vpop.f32.mrf.mxu0
  %v347 = vadd.f32 0.0, %v346
  %v348 = vpop.f32.mrf.mxu0
  %349 = vdwg.mxu0
  %350 = vmatpush.bf16.msra.mxu0 %v318
  %351 = vmatpush.bf16.msra.mxu0 %v314
  %352 = vmatpush.bf16.msra.mxu0 %v310
  %353 = vmatpush.bf16.msra.mxu0 %v306
  %354 = vmatpush.bf16.msra.mxu0 %v302
  %355 = vmatpush.bf16.msra.mxu0 %v298
  %356 = vmatpush.bf16.msra.mxu0 %v294
  %357 = vmatpush.bf16.msra.mxu0 %v290
  %358 = vmatmul.bf16.gmra.mxu0 %v26
  %v359 = vpop.f32.mrf.mxu0
  %v360 = vadd.f32 0.0, %v359
  %v361 = vpop.f32.mrf.mxu0
  %362 = vdwg.mxu0
  %363 = vmatpush.bf16.msra.mxu0 %v319
  %364 = vmatpush.bf16.msra.mxu0 %v315
  %365 = vmatpush.bf16.msra.mxu0 %v311
  %366 = vmatpush.bf16.msra.mxu0 %v307
  %367 = vmatpush.bf16.msra.mxu0 %v303
  %368 = vmatpush.bf16.msra.mxu0 %v299
  %369 = vmatpush.bf16.msra.mxu0 %v295
  %370 = vmatpush.bf16.msra.mxu0 %v291
  %371 = vmatmul.bf16.gmra.mxu0 %v26
  %v372 = vpop.f32.mrf.mxu0
  %v373 = vadd.f32 0.0, %v372
  %v374 = vpop.f32.mrf.mxu0
  %375 = vdwg.mxu0
  %v376 = vadd.f32 %v320, %v334
  %v377 = vadd.f32 %v321, %v347
  %v378 = vadd.f32 %v322, %v360
  %v379 = vadd.f32 %v323, %v373
  %380 = vst [vmem:[%s2] sm:$0xff] %v376
  %381 = vst [vmem:[%s2 + $0x8] sm:$0xff] %v377
  %382 = vst [vmem:[%s2 + $0x10] sm:$0xff] %v378
  %383 = vst [vmem:[%s2 + $0x18] sm:$0xff] %v379
  // Predicated region
  $region14: #{statistic_forward.2} parent=0 // pred_check
    _
  $region15: #{statistic_forward.2} parent=0 // pred_check_branch
    %385 = sbr.rel (0) target = $region17
  $region16: #{statistic_forward.2} parent=0 // pred_region
    _
  $region17: #{statistic_forward.2} parent=0 // pred_fallthru
    _
  // Predicated region
  $region18: #{statistic_forward.2} parent=0 // pred_check
    _
  $region19: #{statistic_forward.2} parent=0 // pred_check_branch
    %387 = sbr.rel (0) target = $region21
  $region20: #{statistic_forward.2} parent=0 // pred_region
    _
  $region21: #{statistic_forward.2} parent=0 // pred_fallthru
    _

// kernel: statistic_forward.3
$region0: #{statistic_forward.3}
  #allocation0 [shape = 'u32[]', space=smem, size = 0x4, offset = 0x4, fixed_abs, tag = 'smem constant byte address 0x4 - core index']
  #allocation1 [shape = 'u32[72,128]{1,0:T(1,128)}', space=vmem, size = 0x9000, scoped, tag = 'internal scratch']
  %s0 = inlined_call_operand.vmem [shape: f32[8,512], index: 0, kind: input, shape index: {}]
  %s1 = inlined_call_operand.hbm [shape: bf16[512,512], index: 1, kind: input, shape index: {}]
  %s2 = inlined_call_operand.vmem [shape: f32[1,512], index: 2, kind: input, shape index: {}]
  %s3 = inlined_call_operand.vmem [shape: f32[1,512], index: 3, kind: input, shape index: {}]
  %s4 = inlined_call_operand.vmem [shape: f32[8,512], index: 4, kind: output, shape index: {}]
  %s5 = sld [smem:[#allocation0]]
  $region30: #{statistic_forward.3} parent=0
    _
  %s7 = ssub.s32 1, %s5
  %s8 = scalar_select 0, %s7, %s5
  $region1: #{statistic_forward.3} parent=0
    #allocation2 [shape = 'u8[524288]{0}', space=vmem, size = 0x80000, scoped, tag = 'input window, operand 1, single buffered']
    #allocation3 [shape = 's32[1]{0}', space=sflag, size = 0x4, scoped, tag = 'scoped memory for statistic_forward.3']
    %9 = vsyncpa [#allocation3], 0
    // Predicated region
    $region2: #{statistic_forward.3} parent=1 // pred_check
      _
    $region3: #{statistic_forward.3} parent=1 // pred_check_branch
      %11 = sbr.rel (0) target = $region5
    $region4: #{statistic_forward.3} parent=1 // pred_region
      _
    $region5: #{statistic_forward.3} parent=1 // pred_fallthru
      _
    // Predicated region
    $region6: #{statistic_forward.3} parent=1 // pred_check
      _
    $region7: #{statistic_forward.3} parent=1 // pred_check_branch
      %13 = sbr.rel (0) target = $region9
    $region8: #{statistic_forward.3} parent=1 // pred_region
      %15 = vsyncadd [#allocation3], 0
      %s16 = sshll.u32 %s1, 4
      %s17 = int_to_ptr.hbm [resolvable:$true] %s16
      %s18 = sshll.u32 [#allocation2], 4
      %s19 = int_to_ptr.vmem [resolvable:$true] %s18
      %24 = dma.hbm_to_vmem [thread:$0]  %s17, 16384, %s19, [#allocation3], 256, 256, 16
    $region9: #{statistic_forward.3} parent=1 // pred_fallthru
      _
    // Predicated region
    $region10: #{statistic_forward.3} parent=1 // pred_check
      _
    $region11: #{statistic_forward.3} parent=1 // pred_check_branch
      %26 = sbr.rel (0) target = $region13
    $region12: #{statistic_forward.3} parent=1 // pred_region
      _
    $region13: #{statistic_forward.3} parent=1 // pred_fallthru
      _
    // Predicated region
    $region14: #{statistic_forward.3} parent=1 // pred_check
      _
    $region15: #{statistic_forward.3} parent=1 // pred_check_branch
      %28 = sbr.rel (0) target = $region17
    $region16: #{statistic_forward.3} parent=1 // pred_region
      _
    $region17: #{statistic_forward.3} parent=1 // pred_fallthru
      _
    // Predicated region
    $region18: #{statistic_forward.3} parent=1 // pred_check
      _
    $region19: #{statistic_forward.3} parent=1 // pred_check_branch
      %30 = sbr.rel (0) target = $region21
    $region20: #{statistic_forward.3} parent=1 // pred_region
      %32 = dma.done [#allocation3], 16384
    $region21: #{statistic_forward.3} parent=1 // pred_fallthru
      _
    %v33 = vld [vmem:[%s0] sm:$0xff]
    %v34 = vld [vmem:[%s0 + $0x8] sm:$0xff]
    %v35 = vld [vmem:[%s0 + $0x10] sm:$0xff]
    %v36 = vld [vmem:[%s0 + $0x18] sm:$0xff]
    %v37 = vadd.f32 %v33, %v34
    %v38 = vadd.f32 %v37, %v35
    %v39 = vadd.f32 %v38, %v36
    %40 = vadd.xlane.f32.xlu0 %v39
    %v41 = vpop.xlane.xlu0 %40
    %v42 = vadd.f32 %v41, 1e-10
    %v43 = vrsqrt.pop %v42
    %v44 = vmul.f32 %v43, %v42
    %v45 = vmul.f32 %v44, %v43
    %v46 = vmul.f32 0.5, %v45
    %v47 = vsub.f32 1.5, %v46
    %v48 = vmul.f32 %v43, %v47
    %vm49 = vweird.f32 %v42
    %vm50 = vweird.f32 %v43
    %vm51 = vmor %vm49, %vm50
    %v52 = vsel %vm51, %v43, %v48
    %v53 = vmul.f32 %v42, %v52
    %v54 = vpack.c.bf16 %v33, %v33
    %v55 = vpack.c.bf16 %v34, %v34
    %v56 = vpack.c.bf16 %v35, %v35
    %v57 = vpack.c.bf16 %v36, %v36
    %v58 = vld [vmem:[#allocation2] sm:$0xff]
    %v59 = vld [vmem:[#allocation2 + $0x8] sm:$0xff]
    %v60 = vld [vmem:[#allocation2 + $0x10] sm:$0xff]
    %v61 = vld [vmem:[#allocation2 + $0x18] sm:$0xff]
    %v62 = vld [vmem:[#allocation2 + $0x20] sm:$0xff]
    %v63 = vld [vmem:[#allocation2 + $0x28] sm:$0xff]
    %v64 = vld [vmem:[#allocation2 + $0x30] sm:$0xff]
    %v65 = vld [vmem:[#allocation2 + $0x38] sm:$0xff]
    %v66 = vld [vmem:[#allocation2 + $0x40] sm:$0xff]
    %v67 = vld [vmem:[#allocation2 + $0x48] sm:$0xff]
    %v68 = vld [vmem:[#allocation2 + $0x50] sm:$0xff]
    %v69 = vld [vmem:[#allocation2 + $0x58] sm:$0xff]
    %v70 = vld [vmem:[#allocation2 + $0x60] sm:$0xff]
    %v71 = vld [vmem:[#allocation2 + $0x68] sm:$0xff]
    %v72 = vld [vmem:[#allocation2 + $0x70] sm:$0xff]
    %v73 = vld [vmem:[#allocation2 + $0x78] sm:$0xff]
    %v74 = vld [vmem:[#allocation2 + $0x80] sm:$0xff]
    %v75 = vld [vmem:[#allocation2 + $0x88] sm:$0xff]
    %v76 = vld [vmem:[#allocation2 + $0x90] sm:$0xff]
    %v77 = vld [vmem:[#allocation2 + $0x98] sm:$0xff]
    %v78 = vld [vmem:[#allocation2 + $0xa0] sm:$0xff]
    %v79 = vld [vmem:[#allocation2 + $0xa8] sm:$0xff]
    %v80 = vld [vmem:[#allocation2 + $0xb0] sm:$0xff]
    %v81 = vld [vmem:[#allocation2 + $0xb8] sm:$0xff]
    %v82 = vld [vmem:[#allocation2 + $0xc0] sm:$0xff]
    %v83 = vld [vmem:[#allocation2 + $0xc8] sm:$0xff]
    %v84 = vld [vmem:[#allocation2 + $0xd0] sm:$0xff]
    %v85 = vld [vmem:[#allocation2 + $0xd8] sm:$0xff]
    %v86 = vld [vmem:[#allocation2 + $0xe0] sm:$0xff]
    %v87 = vld [vmem:[#allocation2 + $0xe8] sm:$0xff]
    %v88 = vld [vmem:[#allocation2 + $0xf0] sm:$0xff]
    %v89 = vld [vmem:[#allocation2 + $0xf8] sm:$0xff]
    %v90 = vld [vmem:[#allocation2 + $0x100] sm:$0xff]
    %v91 = vld [vmem:[#allocation2 + $0x108] sm:$0xff]
    %v92 = vld [vmem:[#allocation2 + $0x110] sm:$0xff]
    %v93 = vld [vmem:[#allocation2 + $0x118] sm:$0xff]
    %v94 = vld [vmem:[#allocation2 + $0x120] sm:$0xff]
    %v95 = vld [vmem:[#allocation2 + $0x128] sm:$0xff]
    %v96 = vld [vmem:[#allocation2 + $0x130] sm:$0xff]
    %v97 = vld [vmem:[#allocation2 + $0x138] sm:$0xff]
    %v98 = vld [vmem:[#allocation2 + $0x140] sm:$0xff]
    %v99 = vld [vmem:[#allocation2 + $0x148] sm:$0xff]
    %v100 = vld [vmem:[#allocation2 + $0x150] sm:$0xff]
    %v101 = vld [vmem:[#allocation2 + $0x158] sm:$0xff]
    %v102 = vld [vmem:[#allocation2 + $0x160] sm:$0xff]
    %v103 = vld [vmem:[#allocation2 + $0x168] sm:$0xff]
    %v104 = vld [vmem:[#allocation2 + $0x170] sm:$0xff]
    %v105 = vld [vmem:[#allocation2 + $0x178] sm:$0xff]
    %v106 = vld [vmem:[#allocation2 + $0x180] sm:$0xff]
    %v107 = vld [vmem:[#allocation2 + $0x188] sm:$0xff]
    %v108 = vld [vmem:[#allocation2 + $0x190] sm:$0xff]
    %v109 = vld [vmem:[#allocation2 + $0x198] sm:$0xff]
    %v110 = vld [vmem:[#allocation2 + $0x1a0] sm:$0xff]
    %v111 = vld [vmem:[#allocation2 + $0x1a8] sm:$0xff]
    %v112 = vld [vmem:[#allocation2 + $0x1b0] sm:$0xff]
    %v113 = vld [vmem:[#allocation2 + $0x1b8] sm:$0xff]
    %v114 = vld [vmem:[#allocation2 + $0x1c0] sm:$0xff]
    %v115 = vld [vmem:[#allocation2 + $0x1c8] sm:$0xff]
    %v116 = vld [vmem:[#allocation2 + $0x1d0] sm:$0xff]
    %v117 = vld [vmem:[#allocation2 + $0x1d8] sm:$0xff]
    %v118 = vld [vmem:[#allocation2 + $0x1e0] sm:$0xff]
    %v119 = vld [vmem:[#allocation2 + $0x1e8] sm:$0xff]
    %v120 = vld [vmem:[#allocation2 + $0x1f0] sm:$0xff]
    %v121 = vld [vmem:[#allocation2 + $0x1f8] sm:$0xff]
    %v122 = vld [vmem:[#allocation2 + $0x200] sm:$0xff]
    %v123 = vld [vmem:[#allocation2 + $0x208] sm:$0xff]
    %v124 = vld [vmem:[#allocation2 + $0x210] sm:$0xff]
    %v125 = vld [vmem:[#allocation2 + $0x218] sm:$0xff]
    %v126 = vld [vmem:[#allocation2 + $0x220] sm:$0xff]
    %v127 = vld [vmem:[#allocation2 + $0x228] sm:$0xff]
    %v128 = vld [vmem:[#allocation2 + $0x230] sm:$0xff]
    %v129 = vld [vmem:[#allocation2 + $0x238] sm:$0xff]
    %v130 = vld [vmem:[#allocation2 + $0x240] sm:$0xff]
    %v131 = vld [vmem:[#allocation2 + $0x248] sm:$0xff]
    %v132 = vld [vmem:[#allocation2 + $0x250] sm:$0xff]
    %v133 = vld [vmem:[#allocation2 + $0x258] sm:$0xff]
    %v134 = vld [vmem:[#allocation2 + $0x260] sm:$0xff]
    %v135 = vld [vmem:[#allocation2 + $0x268] sm:$0xff]
    %v136 = vld [vmem:[#allocation2 + $0x270] sm:$0xff]
    %v137 = vld [vmem:[#allocation2 + $0x278] sm:$0xff]
    %v138 = vld [vmem:[#allocation2 + $0x280] sm:$0xff]
    %v139 = vld [vmem:[#allocation2 + $0x288] sm:$0xff]
    %v140 = vld [vmem:[#allocation2 + $0x290] sm:$0xff]
    %v141 = vld [vmem:[#allocation2 + $0x298] sm:$0xff]
    %v142 = vld [vmem:[#allocation2 + $0x2a0] sm:$0xff]
    %v143 = vld [vmem:[#allocation2 + $0x2a8] sm:$0xff]
    %v144 = vld [vmem:[#allocation2 + $0x2b0] sm:$0xff]
    %v145 = vld [vmem:[#allocation2 + $0x2b8] sm:$0xff]
    %v146 = vld [vmem:[#allocation2 + $0x2c0] sm:$0xff]
    %v147 = vld [vmem:[#allocation2 + $0x2c8] sm:$0xff]
    %v148 = vld [vmem:[#allocation2 + $0x2d0] sm:$0xff]
    %v149 = vld [vmem:[#allocation2 + $0x2d8] sm:$0xff]
    %v150 = vld [vmem:[#allocation2 + $0x2e0] sm:$0xff]
    %v151 = vld [vmem:[#allocation2 + $0x2e8] sm:$0xff]
    %v152 = vld [vmem:[#allocation2 + $0x2f0] sm:$0xff]
    %v153 = vld [vmem:[#allocation2 + $0x2f8] sm:$0xff]
    %v154 = vld [vmem:[#allocation2 + $0x300] sm:$0xff]
    %v155 = vld [vmem:[#allocation2 + $0x308] sm:$0xff]
    %v156 = vld [vmem:[#allocation2 + $0x310] sm:$0xff]
    %v157 = vld [vmem:[#allocation2 + $0x318] sm:$0xff]
    %v158 = vld [vmem:[#allocation2 + $0x320] sm:$0xff]
    %v159 = vld [vmem:[#allocation2 + $0x328] sm:$0xff]
    %v160 = vld [vmem:[#allocation2 + $0x330] sm:$0xff]
    %v161 = vld [vmem:[#allocation2 + $0x338] sm:$0xff]
    %v162 = vld [vmem:[#allocation2 + $0x340] sm:$0xff]
    %v163 = vld [vmem:[#allocation2 + $0x348] sm:$0xff]
    %v164 = vld [vmem:[#allocation2 + $0x350] sm:$0xff]
    %v165 = vld [vmem:[#allocation2 + $0x358] sm:$0xff]
    %v166 = vld [vmem:[#allocation2 + $0x360] sm:$0xff]
    %v167 = vld [vmem:[#allocation2 + $0x368] sm:$0xff]
    %v168 = vld [vmem:[#allocation2 + $0x370] sm:$0xff]
    %v169 = vld [vmem:[#allocation2 + $0x378] sm:$0xff]
    %v170 = vld [vmem:[#allocation2 + $0x380] sm:$0xff]
    %v171 = vld [vmem:[#allocation2 + $0x388] sm:$0xff]
    %v172 = vld [vmem:[#allocation2 + $0x390] sm:$0xff]
    %v173 = vld [vmem:[#allocation2 + $0x398] sm:$0xff]
    %v174 = vld [vmem:[#allocation2 + $0x3a0] sm:$0xff]
    %v175 = vld [vmem:[#allocation2 + $0x3a8] sm:$0xff]
    %v176 = vld [vmem:[#allocation2 + $0x3b0] sm:$0xff]
    %v177 = vld [vmem:[#allocation2 + $0x3b8] sm:$0xff]
    %v178 = vld [vmem:[#allocation2 + $0x3c0] sm:$0xff]
    %v179 = vld [vmem:[#allocation2 + $0x3c8] sm:$0xff]
    %v180 = vld [vmem:[#allocation2 + $0x3d0] sm:$0xff]
    %v181 = vld [vmem:[#allocation2 + $0x3d8] sm:$0xff]
    %v182 = vld [vmem:[#allocation2 + $0x3e0] sm:$0xff]
    %v183 = vld [vmem:[#allocation2 + $0x3e8] sm:$0xff]
    %v184 = vld [vmem:[#allocation2 + $0x3f0] sm:$0xff]
    %v185 = vld [vmem:[#allocation2 + $0x3f8] sm:$0xff]
    %v314 = vunpack.c.l.b16 %v58
    %v315 = vunpack.c.h.b16 %v58
    %v316 = vunpack.c.l.b16 %v59
    %v317 = vunpack.c.h.b16 %v59
    %v318 = vunpack.c.l.b16 %v60
    %v319 = vunpack.c.h.b16 %v60
    %v320 = vunpack.c.l.b16 %v61
    %v321 = vunpack.c.h.b16 %v61
    %v322 = vunpack.c.l.b16 %v62
    %v323 = vunpack.c.h.b16 %v62
    %v324 = vunpack.c.l.b16 %v63
    %v325 = vunpack.c.h.b16 %v63
    %v326 = vunpack.c.l.b16 %v64
    %v327 = vunpack.c.h.b16 %v64
    %v328 = vunpack.c.l.b16 %v65
    %v329 = vunpack.c.h.b16 %v65
    %v330 = vunpack.c.l.b16 %v66
    %v331 = vunpack.c.h.b16 %v66
    %v332 = vunpack.c.l.b16 %v67
    %v333 = vunpack.c.h.b16 %v67
    %v334 = vunpack.c.l.b16 %v68
    %v335 = vunpack.c.h.b16 %v68
    %v336 = vunpack.c.l.b16 %v69
    %v337 = vunpack.c.h.b16 %v69
    %v338 = vunpack.c.l.b16 %v70
    %v339 = vunpack.c.h.b16 %v70
    %v340 = vunpack.c.l.b16 %v71
    %v341 = vunpack.c.h.b16 %v71
    %v342 = vunpack.c.l.b16 %v72
    %v343 = vunpack.c.h.b16 %v72
    %v344 = vunpack.c.l.b16 %v73
    %v345 = vunpack.c.h.b16 %v73
    %v346 = vunpack.c.l.b16 %v74
    %v347 = vunpack.c.h.b16 %v74
    %v348 = vunpack.c.l.b16 %v75
    %v349 = vunpack.c.h.b16 %v75
    %v350 = vunpack.c.l.b16 %v76
    %v351 = vunpack.c.h.b16 %v76
    %v352 = vunpack.c.l.b16 %v77
    %v353 = vunpack.c.h.b16 %v77
    %v354 = vunpack.c.l.b16 %v78
    %v355 = vunpack.c.h.b16 %v78
    %v356 = vunpack.c.l.b16 %v79
    %v357 = vunpack.c.h.b16 %v79
    %v358 = vunpack.c.l.b16 %v80
    %v359 = vunpack.c.h.b16 %v80
    %v360 = vunpack.c.l.b16 %v81
    %v361 = vunpack.c.h.b16 %v81
    %v362 = vunpack.c.l.b16 %v82
    %v363 = vunpack.c.h.b16 %v82
    %v364 = vunpack.c.l.b16 %v83
    %v365 = vunpack.c.h.b16 %v83
    %v366 = vunpack.c.l.b16 %v84
    %v367 = vunpack.c.h.b16 %v84
    %v368 = vunpack.c.l.b16 %v85
    %v369 = vunpack.c.h.b16 %v85
    %v370 = vunpack.c.l.b16 %v86
    %v371 = vunpack.c.h.b16 %v86
    %v372 = vunpack.c.l.b16 %v87
    %v373 = vunpack.c.h.b16 %v87
    %v374 = vunpack.c.l.b16 %v88
    %v375 = vunpack.c.h.b16 %v88
    %v376 = vunpack.c.l.b16 %v89
    %v377 = vunpack.c.h.b16 %v89
    %v378 = vunpack.c.l.b16 %v90
    %v379 = vunpack.c.h.b16 %v90
    %v380 = vunpack.c.l.b16 %v91
    %v381 = vunpack.c.h.b16 %v91
    %v382 = vunpack.c.l.b16 %v92
    %v383 = vunpack.c.h.b16 %v92
    %v384 = vunpack.c.l.b16 %v93
    %v385 = vunpack.c.h.b16 %v93
    %v386 = vunpack.c.l.b16 %v94
    %v387 = vunpack.c.h.b16 %v94
    %v388 = vunpack.c.l.b16 %v95
    %v389 = vunpack.c.h.b16 %v95
    %v390 = vunpack.c.l.b16 %v96
    %v391 = vunpack.c.h.b16 %v96
    %v392 = vunpack.c.l.b16 %v97
    %v393 = vunpack.c.h.b16 %v97
    %v394 = vunpack.c.l.b16 %v98
    %v395 = vunpack.c.h.b16 %v98
    %v396 = vunpack.c.l.b16 %v99
    %v397 = vunpack.c.h.b16 %v99
    %v398 = vunpack.c.l.b16 %v100
    %v399 = vunpack.c.h.b16 %v100
    %v400 = vunpack.c.l.b16 %v101
    %v401 = vunpack.c.h.b16 %v101
    %v402 = vunpack.c.l.b16 %v102
    %v403 = vunpack.c.h.b16 %v102
    %v404 = vunpack.c.l.b16 %v103
    %v405 = vunpack.c.h.b16 %v103
    %v406 = vunpack.c.l.b16 %v104
    %v407 = vunpack.c.h.b16 %v104
    %v408 = vunpack.c.l.b16 %v105
    %v409 = vunpack.c.h.b16 %v105
    %v410 = vunpack.c.l.b16 %v106
    %v411 = vunpack.c.h.b16 %v106
    %v412 = vunpack.c.l.b16 %v107
    %v413 = vunpack.c.h.b16 %v107
    %v414 = vunpack.c.l.b16 %v108
    %v415 = vunpack.c.h.b16 %v108
    %v416 = vunpack.c.l.b16 %v109
    %v417 = vunpack.c.h.b16 %v109
    %v418 = vunpack.c.l.b16 %v110
    %v419 = vunpack.c.h.b16 %v110
    %v420 = vunpack.c.l.b16 %v111
    %v421 = vunpack.c.h.b16 %v111
    %v422 = vunpack.c.l.b16 %v112
    %v423 = vunpack.c.h.b16 %v112
    %v424 = vunpack.c.l.b16 %v113
    %v425 = vunpack.c.h.b16 %v113
    %v426 = vunpack.c.l.b16 %v114
    %v427 = vunpack.c.h.b16 %v114
    %v428 = vunpack.c.l.b16 %v115
    %v429 = vunpack.c.h.b16 %v115
    %v430 = vunpack.c.l.b16 %v116
    %v431 = vunpack.c.h.b16 %v116
    %v432 = vunpack.c.l.b16 %v117
    %v433 = vunpack.c.h.b16 %v117
    %v434 = vunpack.c.l.b16 %v118
    %v435 = vunpack.c.h.b16 %v118
    %v436 = vunpack.c.l.b16 %v119
    %v437 = vunpack.c.h.b16 %v119
    %v438 = vunpack.c.l.b16 %v120
    %v439 = vunpack.c.h.b16 %v120
    %v440 = vunpack.c.l.b16 %v121
    %v441 = vunpack.c.h.b16 %v121
    %v442 = vunpack.c.l.b16 %v122
    %v443 = vunpack.c.h.b16 %v122
    %v444 = vunpack.c.l.b16 %v123
    %v445 = vunpack.c.h.b16 %v123
    %v446 = vunpack.c.l.b16 %v124
    %v447 = vunpack.c.h.b16 %v124
    %v448 = vunpack.c.l.b16 %v125
    %v449 = vunpack.c.h.b16 %v125
    %v450 = vunpack.c.l.b16 %v126
    %v451 = vunpack.c.h.b16 %v126
    %v452 = vunpack.c.l.b16 %v127
    %v453 = vunpack.c.h.b16 %v127
    %v454 = vunpack.c.l.b16 %v128
    %v455 = vunpack.c.h.b16 %v128
    %v456 = vunpack.c.l.b16 %v129
    %v457 = vunpack.c.h.b16 %v129
    %v458 = vunpack.c.l.b16 %v130
    %v459 = vunpack.c.h.b16 %v130
    %v460 = vunpack.c.l.b16 %v131
    %v461 = vunpack.c.h.b16 %v131
    %v462 = vunpack.c.l.b16 %v132
    %v463 = vunpack.c.h.b16 %v132
    %v464 = vunpack.c.l.b16 %v133
    %v465 = vunpack.c.h.b16 %v133
    %v466 = vunpack.c.l.b16 %v134
    %v467 = vunpack.c.h.b16 %v134
    %v468 = vunpack.c.l.b16 %v135
    %v469 = vunpack.c.h.b16 %v135
    %v470 = vunpack.c.l.b16 %v136
    %v471 = vunpack.c.h.b16 %v136
    %v472 = vunpack.c.l.b16 %v137
    %v473 = vunpack.c.h.b16 %v137
    %v474 = vunpack.c.l.b16 %v138
    %v475 = vunpack.c.h.b16 %v138
    %v476 = vunpack.c.l.b16 %v139
    %v477 = vunpack.c.h.b16 %v139
    %v478 = vunpack.c.l.b16 %v140
    %v479 = vunpack.c.h.b16 %v140
    %v480 = vunpack.c.l.b16 %v141
    %v481 = vunpack.c.h.b16 %v141
    %v482 = vunpack.c.l.b16 %v142
    %v483 = vunpack.c.h.b16 %v142
    %v484 = vunpack.c.l.b16 %v143
    %v485 = vunpack.c.h.b16 %v143
    %v486 = vunpack.c.l.b16 %v144
    %v487 = vunpack.c.h.b16 %v144
    %v488 = vunpack.c.l.b16 %v145
    %v489 = vunpack.c.h.b16 %v145
    %v490 = vunpack.c.l.b16 %v146
    %v491 = vunpack.c.h.b16 %v146
    %v492 = vunpack.c.l.b16 %v147
    %v493 = vunpack.c.h.b16 %v147
    %v494 = vunpack.c.l.b16 %v148
    %v495 = vunpack.c.h.b16 %v148
    %v496 = vunpack.c.l.b16 %v149
    %v497 = vunpack.c.h.b16 %v149
    %v498 = vunpack.c.l.b16 %v150
    %v499 = vunpack.c.h.b16 %v150
    %v500 = vunpack.c.l.b16 %v151
    %v501 = vunpack.c.h.b16 %v151
    %v502 = vunpack.c.l.b16 %v152
    %v503 = vunpack.c.h.b16 %v152
    %v504 = vunpack.c.l.b16 %v153
    %v505 = vunpack.c.h.b16 %v153
    %v506 = vunpack.c.l.b16 %v154
    %v507 = vunpack.c.h.b16 %v154
    %v508 = vunpack.c.l.b16 %v155
    %v509 = vunpack.c.h.b16 %v155
    %v510 = vunpack.c.l.b16 %v156
    %v511 = vunpack.c.h.b16 %v156
    %v512 = vunpack.c.l.b16 %v157
    %v513 = vunpack.c.h.b16 %v157
    %v514 = vunpack.c.l.b16 %v158
    %v515 = vunpack.c.h.b16 %v158
    %v516 = vunpack.c.l.b16 %v159
    %v517 = vunpack.c.h.b16 %v159
    %v518 = vunpack.c.l.b16 %v160
    %v519 = vunpack.c.h.b16 %v160
    %v520 = vunpack.c.l.b16 %v161
    %v521 = vunpack.c.h.b16 %v161
    %v522 = vunpack.c.l.b16 %v162
    %v523 = vunpack.c.h.b16 %v162
    %v524 = vunpack.c.l.b16 %v163
    %v525 = vunpack.c.h.b16 %v163
    %v526 = vunpack.c.l.b16 %v164
    %v527 = vunpack.c.h.b16 %v164
    %v528 = vunpack.c.l.b16 %v165
    %v529 = vunpack.c.h.b16 %v165
    %v530 = vunpack.c.l.b16 %v166
    %v531 = vunpack.c.h.b16 %v166
    %v532 = vunpack.c.l.b16 %v167
    %v533 = vunpack.c.h.b16 %v167
    %v534 = vunpack.c.l.b16 %v168
    %v535 = vunpack.c.h.b16 %v168
    %v536 = vunpack.c.l.b16 %v169
    %v537 = vunpack.c.h.b16 %v169
    %v538 = vunpack.c.l.b16 %v170
    %v539 = vunpack.c.h.b16 %v170
    %v540 = vunpack.c.l.b16 %v171
    %v541 = vunpack.c.h.b16 %v171
    %v542 = vunpack.c.l.b16 %v172
    %v543 = vunpack.c.h.b16 %v172
    %v544 = vunpack.c.l.b16 %v173
    %v545 = vunpack.c.h.b16 %v173
    %v546 = vunpack.c.l.b16 %v174
    %v547 = vunpack.c.h.b16 %v174
    %v548 = vunpack.c.l.b16 %v175
    %v549 = vunpack.c.h.b16 %v175
    %v550 = vunpack.c.l.b16 %v176
    %v551 = vunpack.c.h.b16 %v176
    %v552 = vunpack.c.l.b16 %v177
    %v553 = vunpack.c.h.b16 %v177
    %v554 = vunpack.c.l.b16 %v178
    %v555 = vunpack.c.h.b16 %v178
    %v556 = vunpack.c.l.b16 %v179
    %v557 = vunpack.c.h.b16 %v179
    %v558 = vunpack.c.l.b16 %v180
    %v559 = vunpack.c.h.b16 %v180
    %v560 = vunpack.c.l.b16 %v181
    %v561 = vunpack.c.h.b16 %v181
    %v562 = vunpack.c.l.b16 %v182
    %v563 = vunpack.c.h.b16 %v182
    %v564 = vunpack.c.l.b16 %v183
    %v565 = vunpack.c.h.b16 %v183
    %v566 = vunpack.c.l.b16 %v184
    %v567 = vunpack.c.h.b16 %v184
    %v568 = vunpack.c.l.b16 %v185
    %v569 = vunpack.c.h.b16 %v185
    %v570 = vpack.c.b16 %v318, %v314
    %v571 = vpack.c.b16 %v319, %v315
    %v572 = vpack.c.b16 %v320, %v316
    %v573 = vpack.c.b16 %v321, %v317
    %v574 = vpack.c.b16 %v326, %v322
    %v575 = vpack.c.b16 %v327, %v323
    %v576 = vpack.c.b16 %v328, %v324
    %v577 = vpack.c.b16 %v329, %v325
    %v578 = vpack.c.b16 %v334, %v330
    %v579 = vpack.c.b16 %v335, %v331
    %v580 = vpack.c.b16 %v336, %v332
    %v581 = vpack.c.b16 %v337, %v333
    %v582 = vpack.c.b16 %v342, %v338
    %v583 = vpack.c.b16 %v343, %v339
    %v584 = vpack.c.b16 %v344, %v340
    %v585 = vpack.c.b16 %v345, %v341
    %v586 = vpack.c.b16 %v350, %v346
    %v587 = vpack.c.b16 %v351, %v347
    %v588 = vpack.c.b16 %v352, %v348
    %v589 = vpack.c.b16 %v353, %v349
    %v590 = vpack.c.b16 %v358, %v354
    %v591 = vpack.c.b16 %v359, %v355
    %v592 = vpack.c.b16 %v360, %v356
    %v593 = vpack.c.b16 %v361, %v357
    %v594 = vpack.c.b16 %v366, %v362
    %v595 = vpack.c.b16 %v367, %v363
    %v596 = vpack.c.b16 %v368, %v364
    %v597 = vpack.c.b16 %v369, %v365
    %v598 = vpack.c.b16 %v374, %v370
    %v599 = vpack.c.b16 %v375, %v371
    %v600 = vpack.c.b16 %v376, %v372
    %v601 = vpack.c.b16 %v377, %v373
    %v602 = vpack.c.b16 %v382, %v378
    %v603 = vpack.c.b16 %v383, %v379
    %v604 = vpack.c.b16 %v384, %v380
    %v605 = vpack.c.b16 %v385, %v381
    %v606 = vpack.c.b16 %v390, %v386
    %v607 = vpack.c.b16 %v391, %v387
    %v608 = vpack.c.b16 %v392, %v388
    %v609 = vpack.c.b16 %v393, %v389
    %v610 = vpack.c.b16 %v398, %v394
    %v611 = vpack.c.b16 %v399, %v395
    %v612 = vpack.c.b16 %v400, %v396
    %v613 = vpack.c.b16 %v401, %v397
    %v614 = vpack.c.b16 %v406, %v402
    %v615 = vpack.c.b16 %v407, %v403
    %v616 = vpack.c.b16 %v408, %v404
    %v617 = vpack.c.b16 %v409, %v405
    %v618 = vpack.c.b16 %v414, %v410
    %v619 = vpack.c.b16 %v415, %v411
    %v620 = vpack.c.b16 %v416, %v412
    %v621 = vpack.c.b16 %v417, %v413
    %v622 = vpack.c.b16 %v422, %v418
    %v623 = vpack.c.b16 %v423, %v419
    %v624 = vpack.c.b16 %v424, %v420
    %v625 = vpack.c.b16 %v425, %v421
    %v626 = vpack.c.b16 %v430, %v426
    %v627 = vpack.c.b16 %v431, %v427
    %v628 = vpack.c.b16 %v432, %v428
    %v629 = vpack.c.b16 %v433, %v429
    %v630 = vpack.c.b16 %v438, %v434
    %v631 = vpack.c.b16 %v439, %v435
    %v632 = vpack.c.b16 %v440, %v436
    %v633 = vpack.c.b16 %v441, %v437
    %v634 = vpack.c.b16 %v446, %v442
    %v635 = vpack.c.b16 %v447, %v443
    %v636 = vpack.c.b16 %v448, %v444
    %v637 = vpack.c.b16 %v449, %v445
    %v638 = vpack.c.b16 %v454, %v450
    %v639 = vpack.c.b16 %v455, %v451
    %v640 = vpack.c.b16 %v456, %v452
    %v641 = vpack.c.b16 %v457, %v453
    %v642 = vpack.c.b16 %v462, %v458
    %v643 = vpack.c.b16 %v463, %v459
    %v644 = vpack.c.b16 %v464, %v460
    %v645 = vpack.c.b16 %v465, %v461
    %v646 = vpack.c.b16 %v470, %v466
    %v647 = vpack.c.b16 %v471, %v467
    %v648 = vpack.c.b16 %v472, %v468
    %v649 = vpack.c.b16 %v473, %v469
    %v650 = vpack.c.b16 %v478, %v474
    %v651 = vpack.c.b16 %v479, %v475
    %v652 = vpack.c.b16 %v480, %v476
    %v653 = vpack.c.b16 %v481, %v477
    %v654 = vpack.c.b16 %v486, %v482
    %v655 = vpack.c.b16 %v487, %v483
    %v656 = vpack.c.b16 %v488, %v484
    %v657 = vpack.c.b16 %v489, %v485
    %v658 = vpack.c.b16 %v494, %v490
    %v659 = vpack.c.b16 %v495, %v491
    %v660 = vpack.c.b16 %v496, %v492
    %v661 = vpack.c.b16 %v497, %v493
    %v662 = vpack.c.b16 %v502, %v498
    %v663 = vpack.c.b16 %v503, %v499
    %v664 = vpack.c.b16 %v504, %v500
    %v665 = vpack.c.b16 %v505, %v501
    %v666 = vpack.c.b16 %v510, %v506
    %v667 = vpack.c.b16 %v511, %v507
    %v668 = vpack.c.b16 %v512, %v508
    %v669 = vpack.c.b16 %v513, %v509
    %v670 = vpack.c.b16 %v518, %v514
    %v671 = vpack.c.b16 %v519, %v515
    %v672 = vpack.c.b16 %v520, %v516
    %v673 = vpack.c.b16 %v521, %v517
    %v674 = vpack.c.b16 %v526, %v522
    %v675 = vpack.c.b16 %v527, %v523
    %v676 = vpack.c.b16 %v528, %v524
    %v677 = vpack.c.b16 %v529, %v525
    %v678 = vpack.c.b16 %v534, %v530
    %v679 = vpack.c.b16 %v535, %v531
    %v680 = vpack.c.b16 %v536, %v532
    %v681 = vpack.c.b16 %v537, %v533
    %v682 = vpack.c.b16 %v542, %v538
    %v683 = vpack.c.b16 %v543, %v539
    %v684 = vpack.c.b16 %v544, %v540
    %v685 = vpack.c.b16 %v545, %v541
    %v686 = vpack.c.b16 %v550, %v546
    %v687 = vpack.c.b16 %v551, %v547
    %v688 = vpack.c.b16 %v552, %v548
    %v689 = vpack.c.b16 %v553, %v549
    %v690 = vpack.c.b16 %v558, %v554
    %v691 = vpack.c.b16 %v559, %v555
    %v692 = vpack.c.b16 %v560, %v556
    %v693 = vpack.c.b16 %v561, %v557
    %v694 = vpack.c.b16 %v566, %v562
    %v695 = vpack.c.b16 %v567, %v563
    %v696 = vpack.c.b16 %v568, %v564
    %v697 = vpack.c.b16 %v569, %v565
    %826 = vmatpush.bf16.msra.mxu0 %v598
    %827 = vmatpush.bf16.msra.mxu0 %v594
    %828 = vmatpush.bf16.msra.mxu0 %v590
    %829 = vmatpush.bf16.msra.mxu0 %v586
    %830 = vmatpush.bf16.msra.mxu0 %v582
    %831 = vmatpush.bf16.msra.mxu0 %v578
    %832 = vmatpush.bf16.msra.mxu0 %v574
    %833 = vmatpush.bf16.msra.mxu0 %v570
    %834 = vmatmul.bf16.gmra.mxu0 %v54
    %v835 = vpop.f32.mrf.mxu0
    %v836 = vadd.f32 0.0, %v835
    %v837 = vpop.f32.mrf.mxu0
    %838 = vdwg.mxu0
    %839 = vmatpush.bf16.msra.mxu0 %v630
    %840 = vmatpush.bf16.msra.mxu0 %v626
    %841 = vmatpush.bf16.msra.mxu0 %v622
    %842 = vmatpush.bf16.msra.mxu0 %v618
    %843 = vmatpush.bf16.msra.mxu0 %v614
    %844 = vmatpush.bf16.msra.mxu0 %v610
    %845 = vmatpush.bf16.msra.mxu0 %v606
    %846 = vmatpush.bf16.msra.mxu0 %v602
    %847 = vmatmul.bf16.gmra.mxu0 %v55
    %v848 = vpop.f32.mrf.mxu0
    %v849 = vadd.f32 %v836, %v848
    %v850 = vpop.f32.mrf.mxu0
    %851 = vdwg.mxu0
    %852 = vmatpush.bf16.msra.mxu0 %v662
    %853 = vmatpush.bf16.msra.mxu0 %v658
    %854 = vmatpush.bf16.msra.mxu0 %v654
    %855 = vmatpush.bf16.msra.mxu0 %v650
    %856 = vmatpush.bf16.msra.mxu0 %v646
    %857 = vmatpush.bf16.msra.mxu0 %v642
    %858 = vmatpush.bf16.msra.mxu0 %v638
    %859 = vmatpush.bf16.msra.mxu0 %v634
    %860 = vmatmul.bf16.gmra.mxu0 %v56
    %v861 = vpop.f32.mrf.mxu0
    %v862 = vadd.f32 %v849, %v861
    %v863 = vpop.f32.mrf.mxu0
    %864 = vdwg.mxu0
    %865 = vmatpush.bf16.msra.mxu0 %v694
    %866 = vmatpush.bf16.msra.mxu0 %v690
    %867 = vmatpush.bf16.msra.mxu0 %v686
    %868 = vmatpush.bf16.msra.mxu0 %v682
    %869 = vmatpush.bf16.msra.mxu0 %v678
    %870 = vmatpush.bf16.msra.mxu0 %v674
    %871 = vmatpush.bf16.msra.mxu0 %v670
    %872 = vmatpush.bf16.msra.mxu0 %v666
    %873 = vmatmul.bf16.gmra.mxu0 %v57
    %v874 = vpop.f32.mrf.mxu0
    %v875 = vadd.f32 %v862, %v874
    %v876 = vpop.f32.mrf.mxu0
    %877 = vdwg.mxu0
    %878 = vmatpush.bf16.msra.mxu0 %v599
    %879 = vmatpush.bf16.msra.mxu0 %v595
    %880 = vmatpush.bf16.msra.mxu0 %v591
    %881 = vmatpush.bf16.msra.mxu0 %v587
    %882 = vmatpush.bf16.msra.mxu0 %v583
    %883 = vmatpush.bf16.msra.mxu0 %v579
    %884 = vmatpush.bf16.msra.mxu0 %v575
    %885 = vmatpush.bf16.msra.mxu0 %v571
    %886 = vmatmul.bf16.gmra.mxu0 %v54
    %v887 = vpop.f32.mrf.mxu0
    %v888 = vadd.f32 0.0, %v887
    %v889 = vpop.f32.mrf.mxu0
    %890 = vdwg.mxu0
    %891 = vmatpush.bf16.msra.mxu0 %v631
    %892 = vmatpush.bf16.msra.mxu0 %v627
    %893 = vmatpush.bf16.msra.mxu0 %v623
    %894 = vmatpush.bf16.msra.mxu0 %v619
    %895 = vmatpush.bf16.msra.mxu0 %v615
    %896 = vmatpush.bf16.msra.mxu0 %v611
    %897 = vmatpush.bf16.msra.mxu0 %v607
    %898 = vmatpush.bf16.msra.mxu0 %v603
    %899 = vmatmul.bf16.gmra.mxu0 %v55
    %v900 = vpop.f32.mrf.mxu0
    %v901 = vadd.f32 %v888, %v900
    %v902 = vpop.f32.mrf.mxu0
    %903 = vdwg.mxu0
    %904 = vmatpush.bf16.msra.mxu0 %v663
    %905 = vmatpush.bf16.msra.mxu0 %v659
    %906 = vmatpush.bf16.msra.mxu0 %v655
    %907 = vmatpush.bf16.msra.mxu0 %v651
    %908 = vmatpush.bf16.msra.mxu0 %v647
    %909 = vmatpush.bf16.msra.mxu0 %v643
    %910 = vmatpush.bf16.msra.mxu0 %v639
    %911 = vmatpush.bf16.msra.mxu0 %v635
    %912 = vmatmul.bf16.gmra.mxu0 %v56
    %v913 = vpop.f32.mrf.mxu0
    %v914 = vadd.f32 %v901, %v913
    %v915 = vpop.f32.mrf.mxu0
    %916 = vdwg.mxu0
    %917 = vmatpush.bf16.msra.mxu0 %v695
    %918 = vmatpush.bf16.msra.mxu0 %v691
    %919 = vmatpush.bf16.msra.mxu0 %v687
    %920 = vmatpush.bf16.msra.mxu0 %v683
    %921 = vmatpush.bf16.msra.mxu0 %v679
    %922 = vmatpush.bf16.msra.mxu0 %v675
    %923 = vmatpush.bf16.msra.mxu0 %v671
    %924 = vmatpush.bf16.msra.mxu0 %v667
    %925 = vmatmul.bf16.gmra.mxu0 %v57
    %v926 = vpop.f32.mrf.mxu0
    %v927 = vadd.f32 %v914, %v926
    %v928 = vpop.f32.mrf.mxu0
    %929 = vdwg.mxu0
    %930 = vmatpush.bf16.msra.mxu0 %v600
    %931 = vmatpush.bf16.msra.mxu0 %v596
    %932 = vmatpush.bf16.msra.mxu0 %v592
    %933 = vmatpush.bf16.msra.mxu0 %v588
    %934 = vmatpush.bf16.msra.mxu0 %v584
    %935 = vmatpush.bf16.msra.mxu0 %v580
    %936 = vmatpush.bf16.msra.mxu0 %v576
    %937 = vmatpush.bf16.msra.mxu0 %v572
    %938 = vmatmul.bf16.gmra.mxu0 %v54
    %v939 = vpop.f32.mrf.mxu0
    %v940 = vadd.f32 0.0, %v939
    %v941 = vpop.f32.mrf.mxu0
    %942 = vdwg.mxu0
    %943 = vmatpush.bf16.msra.mxu0 %v632
    %944 = vmatpush.bf16.msra.mxu0 %v628
    %945 = vmatpush.bf16.msra.mxu0 %v624
    %946 = vmatpush.bf16.msra.mxu0 %v620
    %947 = vmatpush.bf16.msra.mxu0 %v616
    %948 = vmatpush.bf16.msra.mxu0 %v612
    %949 = vmatpush.bf16.msra.mxu0 %v608
    %950 = vmatpush.bf16.msra.mxu0 %v604
    %951 = vmatmul.bf16.gmra.mxu0 %v55
    %v952 = vpop.f32.mrf.mxu0
    %v953 = vadd.f32 %v940, %v952
    %v954 = vpop.f32.mrf.mxu0
    %955 = vdwg.mxu0
    %956 = vmatpush.bf16.msra.mxu0 %v664
    %957 = vmatpush.bf16.msra.mxu0 %v660
    %958 = vmatpush.bf16.msra.mxu0 %v656
    %959 = vmatpush.bf16.msra.mxu0 %v652
    %960 = vmatpush.bf16.msra.mxu0 %v648
    %961 = vmatpush.bf16.msra.mxu0 %v644
    %962 = vmatpush.bf16.msra.mxu0 %v640
    %963 = vmatpush.bf16.msra.mxu0 %v636
    %964 = vmatmul.bf16.gmra.mxu0 %v56
    %v965 = vpop.f32.mrf.mxu0
    %v966 = vadd.f32 %v953, %v965
    %v967 = vpop.f32.mrf.mxu0
    %968 = vdwg.mxu0
    %969 = vmatpush.bf16.msra.mxu0 %v696
    %970 = vmatpush.bf16.msra.mxu0 %v692
    %971 = vmatpush.bf16.msra.mxu0 %v688
    %972 = vmatpush.bf16.msra.mxu0 %v684
    %973 = vmatpush.bf16.msra.mxu0 %v680
    %974 = vmatpush.bf16.msra.mxu0 %v676
    %975 = vmatpush.bf16.msra.mxu0 %v672
    %976 = vmatpush.bf16.msra.mxu0 %v668
    %977 = vmatmul.bf16.gmra.mxu0 %v57
    %v978 = vpop.f32.mrf.mxu0
    %v979 = vadd.f32 %v966, %v978
    %v980 = vpop.f32.mrf.mxu0
    %981 = vdwg.mxu0
    %982 = vmatpush.bf16.msra.mxu0 %v601
    %983 = vmatpush.bf16.msra.mxu0 %v597
    %984 = vmatpush.bf16.msra.mxu0 %v593
    %985 = vmatpush.bf16.msra.mxu0 %v589
    %986 = vmatpush.bf16.msra.mxu0 %v585
    %987 = vmatpush.bf16.msra.mxu0 %v581
    %988 = vmatpush.bf16.msra.mxu0 %v577
    %989 = vmatpush.bf16.msra.mxu0 %v573
    %990 = vmatmul.bf16.gmra.mxu0 %v54
    %v991 = vpop.f32.mrf.mxu0
    %v992 = vadd.f32 0.0, %v991
    %v993 = vpop.f32.mrf.mxu0
    %994 = vdwg.mxu0
    %995 = vmatpush.bf16.msra.mxu0 %v633
    %996 = vmatpush.bf16.msra.mxu0 %v629
    %997 = vmatpush.bf16.msra.mxu0 %v625
    %998 = vmatpush.bf16.msra.mxu0 %v621
    %999 = vmatpush.bf16.msra.mxu0 %v617
    %1000 = vmatpush.bf16.msra.mxu0 %v613
    %1001 = vmatpush.bf16.msra.mxu0 %v609
    %1002 = vmatpush.bf16.msra.mxu0 %v605
    %1003 = vmatmul.bf16.gmra.mxu0 %v55
    %v1004 = vpop.f32.mrf.mxu0
    %v1005 = vadd.f32 %v992, %v1004
    %v1006 = vpop.f32.mrf.mxu0
    %1007 = vdwg.mxu0
    %1008 = vmatpush.bf16.msra.mxu0 %v665
    %1009 = vmatpush.bf16.msra.mxu0 %v661
    %1010 = vmatpush.bf16.msra.mxu0 %v657
    %1011 = vmatpush.bf16.msra.mxu0 %v653
    %1012 = vmatpush.bf16.msra.mxu0 %v649
    %1013 = vmatpush.bf16.msra.mxu0 %v645
    %1014 = vmatpush.bf16.msra.mxu0 %v641
    %1015 = vmatpush.bf16.msra.mxu0 %v637
    %1016 = vmatmul.bf16.gmra.mxu0 %v56
    %v1017 = vpop.f32.mrf.mxu0
    %v1018 = vadd.f32 %v1005, %v1017
    %v1019 = vpop.f32.mrf.mxu0
    %1020 = vdwg.mxu0
    %1021 = vmatpush.bf16.msra.mxu0 %v697
    %1022 = vmatpush.bf16.msra.mxu0 %v693
    %1023 = vmatpush.bf16.msra.mxu0 %v689
    %1024 = vmatpush.bf16.msra.mxu0 %v685
    %1025 = vmatpush.bf16.msra.mxu0 %v681
    %1026 = vmatpush.bf16.msra.mxu0 %v677
    %1027 = vmatpush.bf16.msra.mxu0 %v673
    %1028 = vmatpush.bf16.msra.mxu0 %v669
    %1029 = vmatmul.bf16.gmra.mxu0 %v57
    %v1030 = vpop.f32.mrf.mxu0
    %v1031 = vadd.f32 %v1018, %v1030
    %v1032 = vpop.f32.mrf.mxu0
    %1033 = vdwg.mxu0
    %v1034 = vmul.f32 %v52, %v875
    %v1035 = vmul.f32 %v52, %v927
    %v1036 = vmul.f32 %v52, %v979
    %v1037 = vmul.f32 %v52, %v1031
    %v1038 = vld [vmem:[%s2] sm:$0xf]
    %v1040 = vperm.slane %v1038, 0
    %v1041 = vperm.slane %v1038, 1
    %v1042 = vperm.slane %v1038, 2
    %v1043 = vperm.slane %v1038, 3
    %v1048 = vmul.f32 %v53, %v1040
    %v1049 = vmul.f32 %v53, %v1041
    %v1050 = vmul.f32 %v53, %v1042
    %v1051 = vmul.f32 %v53, %v1043
    %v1052 = vsub.f32 %v1034, %v1048
    %v1053 = vsub.f32 %v1035, %v1049
    %v1054 = vsub.f32 %v1036, %v1050
    %v1055 = vsub.f32 %v1037, %v1051
    %v1056 = vld [vmem:[%s3] sm:$0xf]
    %v1058 = vperm.slane %v1056, 0
    %v1059 = vperm.slane %v1056, 1
    %v1060 = vperm.slane %v1056, 2
    %v1061 = vperm.slane %v1056, 3
    %v1066 = vadd.f32 %v1052, %v1058
    %v1067 = vadd.f32 %v1053, %v1059
    %v1068 = vadd.f32 %v1054, %v1060
    %v1069 = vadd.f32 %v1055, %v1061
    %v1070 = vmax.f32 %v1066, 0.0
    %v1071 = vmax.f32 %v1067, 0.0
    %v1072 = vmax.f32 %v1068, 0.0
    %v1073 = vmax.f32 %v1069, 0.0
    %1074 = vst [vmem:[%s4] sm:$0xff] %v1070
    %1075 = vst [vmem:[%s4 + $0x8] sm:$0xff] %v1071
    %1076 = vst [vmem:[%s4 + $0x10] sm:$0xff] %v1072
    %1077 = vst [vmem:[%s4 + $0x18] sm:$0xff] %v1073
    // Predicated region
    $region22: #{statistic_forward.3} parent=1 // pred_check
      _
    $region23: #{statistic_forward.3} parent=1 // pred_check_branch
      %1079 = sbr.rel (0) target = $region25
    $region24: #{statistic_forward.3} parent=1 // pred_region
      _
    $region25: #{statistic_forward.3} parent=1 // pred_fallthru
      _
    // Predicated region
    $region26: #{statistic_forward.3} parent=1 // pred_check
      _
    $region27: #{statistic_forward.3} parent=1 // pred_check_branch
      %1081 = sbr.rel (0) target = $region29
    $region28: #{statistic_forward.3} parent=1 // pred_region
      _
    $region29: #{statistic_forward.3} parent=1 // pred_fallthru
      _
    %1082 = vsyncpa [#allocation3], 1

</llo_original>
